<compile_context>
chip_gen: v6e
topology: v6e:2x2x1
jax: 0.10.0
libtpu: 0.0.40
codegen_flags: <defaults>
</compile_context>

<pallas_src>
import functools
import numpy as np

import jax
import jax.numpy as jnp
from jax.experimental import pallas as pl
from jax.experimental.pallas import tpu as pltpu

SAMPLE_RATE = 100
DURATION = 30 * SAMPLE_RATE              # 3000 samples
HOP_LENGTH = 15
N_FFT = 60
WIN_LENGTH = 30
N_FREQ = N_FFT // 2 + 1                  # 31 one-sided bins
N_FRAMES = DURATION // HOP_LENGTH + 1    # 201 STFT frames (center=True)
PAD = 500
EPS = 1e-8

_F2 = 2 * N_FREQ                         # 62 : stacked (re | im) contraction dim
_NB = DURATION // HOP_LENGTH             # 200: hop-blocks per cropped waveform
_LOG10_INV = float(1.0 / np.log(10.0))


# ----------------------------------------------------------------------------
# Host constant: windowed irfft basis with the hann^2 OLA envelope folded in.
# ----------------------------------------------------------------------------
def _istft_basis():
    # torch.hann_window(WIN_LENGTH) is periodic.
    w = 0.5 * (1.0 - np.cos(2.0 * np.pi * np.arange(WIN_LENGTH) / WIN_LENGTH))
    lpad = (N_FFT - WIN_LENGTH) // 2                       # 15
    w_pad = np.zeros(N_FFT, dtype=np.float64)
    w_pad[lpad:lpad + WIN_LENGTH] = w

    n = np.arange(N_FFT)
    k = np.arange(N_FREQ)
    ang = 2.0 * np.pi * np.outer(k, n) / N_FFT             # [31, 60]
    c_re = np.full(N_FREQ, 2.0); c_re[0] = 1.0; c_re[-1] = 1.0
    c_im = np.full(N_FREQ, 2.0); c_im[0] = 0.0; c_im[-1] = 0.0   # irfft drops DC/Nyquist imag
    C = (c_re[:, None] * np.cos(ang)) / N_FFT
    S = (-c_im[:, None] * np.sin(ang)) / N_FFT
    CW = C * w_pad[None, :]                                # windowed cos basis  [31, 60]
    SW = S * w_pad[None, :]                                # windowed -sin basis [31, 60]

    # Padded window is nonzero only for taps n = 15..44, so each output sample gets
    # exactly two frame contributions.  Rows 0..14 = taps 15..29 (needs frame Bk+1),
    # rows 16..30 = taps 30..44 (frame Bk); rows 15/31 are zero alignment pads.
    basis = np.zeros((32, _F2), dtype=np.float64)
    basis[0:15, 0:N_FREQ] = CW[:, 15:30].T
    basis[0:15, N_FREQ:] = SW[:, 15:30].T
    basis[16:31, 0:N_FREQ] = CW[:, 30:45].T
    basis[16:31, N_FREQ:] = SW[:, 30:45].T

    # torch.istft envelope over the cropped region is periodic in r = sample mod hop:
    # env(r) = hann(r)^2 + hann(r+15)^2.  Both contributions to a sample share the
    # same env(r), so 1/env folds directly into the basis rows (saves a constant
    # input, its DMA and an in-kernel broadcast multiply).
    r = np.arange(HOP_LENGTH)
    inv_env = 1.0 / (w[r] ** 2 + w[r + HOP_LENGTH] ** 2)
    basis[0:15, :] *= inv_env[:, None]
    basis[16:31, :] *= inv_env[:, None]

    return jnp.asarray(basis, jnp.float32)


# ----------------------------------------------------------------------------
# Per-batch fused kernel step: MSE + ISTFT + window stats + partial loss.
# ----------------------------------------------------------------------------
def _loss_kernel(pidx_ref, sidx_ref,                 # SMEM scalar prefetch, (B,)
                 out_ref, mask_ref, spec_ref,        # [62, 201] VMEM (batch dim squeezed)
                 basis_ref,                          # [32, 62]
                 loss_ref,                           # [1, 1] per-batch partial
                 *, alpha, beta, batch):
    b = pl.program_id(0)
    basis = basis_ref[...]                           # [32, 62]

    out_b = out_ref[...]                             # [62, 201]
    mask_b = mask_ref[...]
    spec_b = spec_ref[...]

    # ---- MSE partial (nn.MSELoss mean over all B*2*F*T elements) ------------
    d = out_b - mask_b
    mse_sum = jnp.sum(d * d, keepdims=True)          # (1, 1)

    # ---- ISTFT frames: two small MXU matmuls, no lane concatenation ---------
    frames_d = jnp.dot(basis, spec_b * out_b, preferred_element_type=jnp.float32)  # [32,201]
    frames_o = jnp.dot(basis, spec_b, preferred_element_type=jnp.float32)          # [32,201]

    # ---- overlap-add: window spans 2 hops -> ONE 1-lane shift per wave ------
    # wave[r, Bk] = frames[r, Bk+1] + frames[16+r, Bk]   (envelope already folded in)
    wave_d = frames_d[0:16, 1:N_FRAMES] + frames_d[16:32, 0:_NB]   # [16, 200]
    wave_o = frames_o[0:16, 1:N_FRAMES] + frames_o[16:32, 0:_NB]

    # ---- per-window statistics: single-pass raw moments, fused select mask --
    r_iota = jax.lax.broadcasted_iota(jnp.int32, (16, _NB), 0)
    blk_iota = jax.lax.broadcasted_iota(jnp.int32, (16, _NB), 1)
    s_idx = blk_iota * HOP_LENGTH + r_iota            # absolute sample in [0, 3000)
    valid = r_iota < HOP_LENGTH                       # row 15 is a phantom zero row

    w_f = float(PAD)
    inv_w = 1.0 / w_f
    inv_wm1 = 1.0 / (w_f - 1.0)

    def win_stats(start):
        cond = valid & (s_idx >= start) & (s_idx < start + PAD)
        xs = jnp.where(cond, wave_d, 0.0)
        ys = jnp.where(cond, wave_o, 0.0)
        sx = jnp.sum(xs, keepdims=True)               # (1, 1) each
        sy = jnp.sum(ys, keepdims=True)
        sxx = jnp.sum(xs * xs, keepdims=True)
        syy = jnp.sum(ys * ys, keepdims=True)
        sxy = jnp.sum(xs * ys, keepdims=True)
        var_x = jnp.maximum(sxx - sx * sx * inv_w, 0.0)
        var_y = jnp.maximum(syy - sy * sy * inv_w, 0.0)
        std_x = jnp.sqrt(var_x * inv_wm1)             # torch.std: ddof = 1
        std_y = jnp.sqrt(var_y * inv_wm1)
        cov = (sxy - sx * sy * inv_w) * inv_w         # (xm*ym).mean(): / W
        rho = cov / (std_x * std_y + EPS)
        return std_x, rho

    p0 = pidx_ref[b] - PAD                            # P window = [pidx-500, pidx)
    s0 = sidx_ref[b] - PAD                            # S window = [sidx-500, sidx)
    std_p, rho_p = win_stats(p0)
    std_s, rho_s = win_stats(s0)

    # Reference quirk: idx[:, :pad] == idx[:, :-pad], so the "N" windows coincide
    # with the "P" windows (std(dn_N) == std(dn_P), rhoN == rhoP).
    psnr = jnp.log(std_p / (std_p + EPS)) * _LOG10_INV
    ssnr = jnp.log(std_s / (std_p + EPS)) * _LOG10_INV
    rho_sum = 2.0 * rho_p + rho_s

    inv_b = 1.0 / float(batch)
    mse_part = mse_sum * (1.0 / float(batch * _F2 * N_FRAMES))
    loss_ref[...] = (mse_part
                     - alpha * (psnr + ssnr) * inv_b
                     - beta * rho_sum * inv_b)


# ----------------------------------------------------------------------------
# Wrapper: three free reshapes, one pallas_call over the batch grid, tiny sum.
# ----------------------------------------------------------------------------
@functools.partial(jax.jit, static_argnames=("alpha", "beta"))
def custom_loss(output, mask, spec, pidx, sidx, alpha, beta):
    B = output.shape[0]
    # [B,2,F,T] -> [B, 2F, T]: contiguous reshape, no transpose/copy.
    out3 = output.reshape(B, _F2, N_FRAMES).astype(jnp.float32)
    mask3 = mask.reshape(B, _F2, N_FRAMES).astype(jnp.float32)
    spec3 = spec.reshape(B, _F2, N_FRAMES).astype(jnp.float32)
    basis = _istft_basis()

    kern = functools.partial(_loss_kernel,
                             alpha=float(alpha), beta=float(beta), batch=B)

    blk_in = pl.BlockSpec((None, _F2, N_FRAMES), lambda b, p, s: (b, 0, 0))
    blk_basis = pl.BlockSpec((32, _F2), lambda b, p, s: (0, 0))
    blk_out = pl.BlockSpec((None, 1, 1), lambda b, p, s: (b, 0, 0))

    partials = pl.pallas_call(
        kern,
        grid_spec=pltpu.PrefetchScalarGridSpec(
            num_scalar_prefetch=2,
            grid=(B,),
            in_specs=[blk_in, blk_in, blk_in, blk_basis],
            out_specs=blk_out,
        ),
        out_shape=jax.ShapeDtypeStruct((B, 1, 1), jnp.float32),
        compiler_params=pltpu.CompilerParams(
            dimension_semantics=("parallel",)),    # v7x: both TCs; v5e/v6e: no-op
    )(pidx.astype(jnp.int32), sidx.astype(jnp.int32), out3, mask3, spec3, basis)

    # One tiny XLA add combines the per-batch (per-core on v7x) partial losses.
    return jnp.sum(partials)


if __name__ == "__main__":
    key = jax.random.PRNGKey(0)
    k1, k2, k3 = jax.random.split(key, 3)

    B = 2
    output = jax.random.uniform(k1, (B, 2, N_FREQ, N_FRAMES), dtype=jnp.float32)
    mask = jax.random.uniform(k2, (B, 2, N_FREQ, N_FRAMES), dtype=jnp.float32)
    spec = jax.random.normal(k3, (B, 2, N_FREQ, N_FRAMES), dtype=jnp.float32)
    pidx = jnp.array([1200, 800], dtype=jnp.int32)   # P-phase sample indices
    sidx = jnp.array([2200, 1700], dtype=jnp.int32)  # S-phase sample indices

    alpha, beta = 0.1, 0.05

    loss = custom_loss(output, mask, spec, pidx, sidx, alpha, beta)
    jax.block_until_ready(loss)
    assert jnp.isfinite(loss)
    print("KERNEL_OK")
</pallas_src>

<mosaic_0001>
module attributes {stable_mosaic.version = 11 : i64} {
  func.func @_loss_kernel(%arg0: i32, %arg1: memref<2xi32, #tpu.memory_space<smem>>, %arg2: memref<2xi32, #tpu.memory_space<smem>>, %arg3: memref<1x62x201xf32, #tpu.memory_space<vmem>>, %arg4: memref<1x62x201xf32, #tpu.memory_space<vmem>>, %arg5: memref<1x62x201xf32, #tpu.memory_space<vmem>>, %arg6: memref<32x62xf32, #tpu.memory_space<vmem>>, %arg7: memref<1x1x1xf32, #tpu.memory_space<vmem>>) attributes {dimension_semantics = [#tpu.dimension_semantics<parallel>], iteration_bounds = array<i64: 2>, scalar_prefetch = 2 : i64, scratch_operands = 0 : i64, tpu.core_type = #tpu.core_type<tc>, window_params = [{transform_indices = @transform_0, window_bounds = array<i64: 1, 62, 201>}, {transform_indices = @transform_1, window_bounds = array<i64: 1, 62, 201>}, {transform_indices = @transform_2, window_bounds = array<i64: 1, 62, 201>}, {pipeline_mode = #tpu.pipeline_mode<synchronous>, transform_indices = @transform_3, window_bounds = array<i64: 32, 62>}, {transform_indices = @transform_4, window_bounds = array<i64: 1, 1, 1>}]} {
    %c0 = arith.constant 0 : index
    %c0_0 = arith.constant 0 : index
    %0 = vector.load %arg6[%c0, %c0_0] : memref<32x62xf32, #tpu.memory_space<vmem>>, vector<32x62xf32>
    %c0_1 = arith.constant 0 : index
    %c0_2 = arith.constant 0 : index
    %c0_3 = arith.constant 0 : index
    %1 = vector.load %arg3[%c0_1, %c0_2, %c0_3] : memref<1x62x201xf32, #tpu.memory_space<vmem>>, vector<1x62x201xf32>
    %2 = vector.shape_cast %1 : vector<1x62x201xf32> to vector<62x201xf32>
    %c0_4 = arith.constant 0 : index
    %c0_5 = arith.constant 0 : index
    %c0_6 = arith.constant 0 : index
    %3 = vector.load %arg4[%c0_4, %c0_5, %c0_6] : memref<1x62x201xf32, #tpu.memory_space<vmem>>, vector<1x62x201xf32>
    %4 = vector.shape_cast %3 : vector<1x62x201xf32> to vector<62x201xf32>
    %c0_7 = arith.constant 0 : index
    %c0_8 = arith.constant 0 : index
    %c0_9 = arith.constant 0 : index
    %5 = vector.load %arg5[%c0_7, %c0_8, %c0_9] : memref<1x62x201xf32, #tpu.memory_space<vmem>>, vector<1x62x201xf32>
    %6 = vector.shape_cast %5 : vector<1x62x201xf32> to vector<62x201xf32>
    %7 = arith.subf %2, %4 : vector<62x201xf32>
    %8 = arith.mulf %7, %7 : vector<62x201xf32>
    %9 = vector.shape_cast %8 : vector<62x201xf32> to vector<1x62x201xf32>
    %cst = arith.constant dense<0.000000e+00> : vector<1xf32>
    %10 = vector.multi_reduction <add>, %9, %cst [1, 2] : vector<1x62x201xf32> to vector<1xf32>
    %11 = vector.shape_cast %10 : vector<1xf32> to vector<1x1x1xf32>
    %12 = vector.extract %11[0, 0, 0] : f32 from vector<1x1x1xf32>
    %13 = vector.broadcast %12 : f32 to vector<1x1xf32>
    %14 = arith.mulf %6, %2 : vector<62x201xf32>
    %cst_10 = arith.constant dense<0.000000e+00> : vector<32x201xf32>
    %15 = tpu.matmul %0, %14, %cst_10 {dimension_numbers = #tpu.dot_dimension_numbers<[1], [0], [0], [1], [0, 0, 1, 1], [], []>} : vector<32x62xf32>, vector<62x201xf32>, vector<32x201xf32> -> vector<32x201xf32>
    %cst_11 = arith.constant dense<0.000000e+00> : vector<32x201xf32>
    %16 = tpu.matmul %0, %6, %cst_11 {dimension_numbers = #tpu.dot_dimension_numbers<[1], [0], [0], [1], [0, 0, 1, 1], [], []>} : vector<32x62xf32>, vector<62x201xf32>, vector<32x201xf32> -> vector<32x201xf32>
    %17 = vector.extract_strided_slice %15 {offsets = [0, 1], sizes = [16, 200], strides = [1, 1]} : vector<32x201xf32> to vector<16x200xf32>
    %18 = vector.extract_strided_slice %15 {offsets = [16, 0], sizes = [16, 200], strides = [1, 1]} : vector<32x201xf32> to vector<16x200xf32>
    %19 = arith.addf %17, %18 : vector<16x200xf32>
    %20 = vector.extract_strided_slice %16 {offsets = [0, 1], sizes = [16, 200], strides = [1, 1]} : vector<32x201xf32> to vector<16x200xf32>
    %21 = vector.extract_strided_slice %16 {offsets = [16, 0], sizes = [16, 200], strides = [1, 1]} : vector<32x201xf32> to vector<16x200xf32>
    %22 = arith.addf %20, %21 : vector<16x200xf32>
    %23 = tpu.iota {dimensions = array<i32: 0>} : vector<16x200xi32>
    %24 = tpu.iota {dimensions = array<i32: 1>} : vector<16x200xi32>
    %c15_i32 = arith.constant 15 : i32
    %25 = vector.broadcast %c15_i32 : i32 to vector<16x200xi32>
    %26 = arith.muli %24, %25 : vector<16x200xi32>
    %27 = arith.addi %26, %23 : vector<16x200xi32>
    %c15_i32_12 = arith.constant 15 : i32
    %28 = vector.broadcast %c15_i32_12 : i32 to vector<16x200xi32>
    %29 = arith.cmpi slt, %23, %28 : vector<16x200xi32>
    %30 = arith.index_cast %arg0 : i32 to index
    %31 = memref.load %arg1[%30] : memref<2xi32, #tpu.memory_space<smem>>
    %c500_i32 = arith.constant 500 : i32
    %32 = arith.subi %31, %c500_i32 : i32
    %33 = arith.index_cast %arg0 : i32 to index
    %34 = memref.load %arg2[%33] : memref<2xi32, #tpu.memory_space<smem>>
    %c500_i32_13 = arith.constant 500 : i32
    %35 = arith.subi %34, %c500_i32_13 : i32
    %36 = vector.broadcast %32 : i32 to vector<16x200xi32>
    %37 = arith.cmpi sge, %27, %36 : vector<16x200xi32>
    %38 = arith.andi %29, %37 : vector<16x200xi1>
    %c500_i32_14 = arith.constant 500 : i32
    %39 = arith.addi %32, %c500_i32_14 : i32
    %40 = vector.broadcast %39 : i32 to vector<16x200xi32>
    %41 = arith.cmpi slt, %27, %40 : vector<16x200xi32>
    %42 = arith.andi %38, %41 : vector<16x200xi1>
    %cst_15 = arith.constant 0.000000e+00 : f32
    %43 = vector.broadcast %cst_15 : f32 to vector<16x200xf32>
    %44 = arith.select %42, %19, %43 : vector<16x200xi1>, vector<16x200xf32>
    %cst_16 = arith.constant 0.000000e+00 : f32
    %45 = vector.broadcast %cst_16 : f32 to vector<16x200xf32>
    %46 = arith.select %42, %22, %45 : vector<16x200xi1>, vector<16x200xf32>
    %47 = vector.shape_cast %44 : vector<16x200xf32> to vector<1x16x200xf32>
    %cst_17 = arith.constant dense<0.000000e+00> : vector<1xf32>
    %48 = vector.multi_reduction <add>, %47, %cst_17 [1, 2] : vector<1x16x200xf32> to vector<1xf32>
    %49 = vector.shape_cast %48 : vector<1xf32> to vector<1x1x1xf32>
    %50 = vector.extract %49[0, 0, 0] : f32 from vector<1x1x1xf32>
    %51 = vector.broadcast %50 : f32 to vector<1x1xf32>
    %52 = vector.shape_cast %46 : vector<16x200xf32> to vector<1x16x200xf32>
    %cst_18 = arith.constant dense<0.000000e+00> : vector<1xf32>
    %53 = vector.multi_reduction <add>, %52, %cst_18 [1, 2] : vector<1x16x200xf32> to vector<1xf32>
    %54 = vector.shape_cast %53 : vector<1xf32> to vector<1x1x1xf32>
    %55 = vector.extract %54[0, 0, 0] : f32 from vector<1x1x1xf32>
    %56 = vector.broadcast %55 : f32 to vector<1x1xf32>
    %57 = arith.mulf %44, %44 : vector<16x200xf32>
    %58 = vector.shape_cast %57 : vector<16x200xf32> to vector<1x16x200xf32>
    %cst_19 = arith.constant dense<0.000000e+00> : vector<1xf32>
    %59 = vector.multi_reduction <add>, %58, %cst_19 [1, 2] : vector<1x16x200xf32> to vector<1xf32>
    %60 = vector.shape_cast %59 : vector<1xf32> to vector<1x1x1xf32>
    %61 = vector.extract %60[0, 0, 0] : f32 from vector<1x1x1xf32>
    %62 = vector.broadcast %61 : f32 to vector<1x1xf32>
    %63 = arith.mulf %46, %46 : vector<16x200xf32>
    %64 = vector.shape_cast %63 : vector<16x200xf32> to vector<1x16x200xf32>
    %cst_20 = arith.constant dense<0.000000e+00> : vector<1xf32>
    %65 = vector.multi_reduction <add>, %64, %cst_20 [1, 2] : vector<1x16x200xf32> to vector<1xf32>
    %66 = vector.shape_cast %65 : vector<1xf32> to vector<1x1x1xf32>
    %67 = vector.extract %66[0, 0, 0] : f32 from vector<1x1x1xf32>
    %68 = vector.broadcast %67 : f32 to vector<1x1xf32>
    %69 = arith.mulf %44, %46 : vector<16x200xf32>
    %70 = vector.shape_cast %69 : vector<16x200xf32> to vector<1x16x200xf32>
    %cst_21 = arith.constant dense<0.000000e+00> : vector<1xf32>
    %71 = vector.multi_reduction <add>, %70, %cst_21 [1, 2] : vector<1x16x200xf32> to vector<1xf32>
    %72 = vector.shape_cast %71 : vector<1xf32> to vector<1x1x1xf32>
    %73 = vector.extract %72[0, 0, 0] : f32 from vector<1x1x1xf32>
    %74 = vector.broadcast %73 : f32 to vector<1x1xf32>
    %75 = arith.mulf %51, %51 : vector<1x1xf32>
    %cst_22 = arith.constant 2.000000e-03 : f32
    %76 = vector.broadcast %cst_22 : f32 to vector<1x1xf32>
    %77 = arith.mulf %75, %76 : vector<1x1xf32>
    %78 = arith.subf %62, %77 : vector<1x1xf32>
    %cst_23 = arith.constant 0.000000e+00 : f32
    %79 = vector.broadcast %cst_23 : f32 to vector<1x1xf32>
    %80 = arith.maximumf %78, %79 : vector<1x1xf32>
    %81 = arith.mulf %56, %56 : vector<1x1xf32>
    %cst_24 = arith.constant 2.000000e-03 : f32
    %82 = vector.broadcast %cst_24 : f32 to vector<1x1xf32>
    %83 = arith.mulf %81, %82 : vector<1x1xf32>
    %84 = arith.subf %68, %83 : vector<1x1xf32>
    %cst_25 = arith.constant 0.000000e+00 : f32
    %85 = vector.broadcast %cst_25 : f32 to vector<1x1xf32>
    %86 = arith.maximumf %84, %85 : vector<1x1xf32>
    %cst_26 = arith.constant 0.00200400804 : f32
    %87 = vector.broadcast %cst_26 : f32 to vector<1x1xf32>
    %88 = arith.mulf %80, %87 : vector<1x1xf32>
    %89 = math.sqrt %88 : vector<1x1xf32>
    %cst_27 = arith.constant 0.00200400804 : f32
    %90 = vector.broadcast %cst_27 : f32 to vector<1x1xf32>
    %91 = arith.mulf %86, %90 : vector<1x1xf32>
    %92 = math.sqrt %91 : vector<1x1xf32>
    %93 = arith.mulf %51, %56 : vector<1x1xf32>
    %cst_28 = arith.constant 2.000000e-03 : f32
    %94 = vector.broadcast %cst_28 : f32 to vector<1x1xf32>
    %95 = arith.mulf %93, %94 : vector<1x1xf32>
    %96 = arith.subf %74, %95 : vector<1x1xf32>
    %cst_29 = arith.constant 2.000000e-03 : f32
    %97 = vector.broadcast %cst_29 : f32 to vector<1x1xf32>
    %98 = arith.mulf %96, %97 : vector<1x1xf32>
    %99 = arith.mulf %89, %92 : vector<1x1xf32>
    %cst_30 = arith.constant 9.99999993E-9 : f32
    %100 = vector.broadcast %cst_30 : f32 to vector<1x1xf32>
    %101 = arith.addf %99, %100 : vector<1x1xf32>
    %102 = arith.divf %98, %101 : vector<1x1xf32>
    %103 = vector.broadcast %35 : i32 to vector<16x200xi32>
    %104 = arith.cmpi sge, %27, %103 : vector<16x200xi32>
    %105 = arith.andi %29, %104 : vector<16x200xi1>
    %c500_i32_31 = arith.constant 500 : i32
    %106 = arith.addi %35, %c500_i32_31 : i32
    %107 = vector.broadcast %106 : i32 to vector<16x200xi32>
    %108 = arith.cmpi slt, %27, %107 : vector<16x200xi32>
    %109 = arith.andi %105, %108 : vector<16x200xi1>
    %cst_32 = arith.constant 0.000000e+00 : f32
    %110 = vector.broadcast %cst_32 : f32 to vector<16x200xf32>
    %111 = arith.select %109, %19, %110 : vector<16x200xi1>, vector<16x200xf32>
    %cst_33 = arith.constant 0.000000e+00 : f32
    %112 = vector.broadcast %cst_33 : f32 to vector<16x200xf32>
    %113 = arith.select %109, %22, %112 : vector<16x200xi1>, vector<16x200xf32>
    %114 = vector.shape_cast %111 : vector<16x200xf32> to vector<1x16x200xf32>
    %cst_34 = arith.constant dense<0.000000e+00> : vector<1xf32>
    %115 = vector.multi_reduction <add>, %114, %cst_34 [1, 2] : vector<1x16x200xf32> to vector<1xf32>
    %116 = vector.shape_cast %115 : vector<1xf32> to vector<1x1x1xf32>
    %117 = vector.extract %116[0, 0, 0] : f32 from vector<1x1x1xf32>
    %118 = vector.broadcast %117 : f32 to vector<1x1xf32>
    %119 = vector.shape_cast %113 : vector<16x200xf32> to vector<1x16x200xf32>
    %cst_35 = arith.constant dense<0.000000e+00> : vector<1xf32>
    %120 = vector.multi_reduction <add>, %119, %cst_35 [1, 2] : vector<1x16x200xf32> to vector<1xf32>
    %121 = vector.shape_cast %120 : vector<1xf32> to vector<1x1x1xf32>
    %122 = vector.extract %121[0, 0, 0] : f32 from vector<1x1x1xf32>
    %123 = vector.broadcast %122 : f32 to vector<1x1xf32>
    %124 = arith.mulf %111, %111 : vector<16x200xf32>
    %125 = vector.shape_cast %124 : vector<16x200xf32> to vector<1x16x200xf32>
    %cst_36 = arith.constant dense<0.000000e+00> : vector<1xf32>
    %126 = vector.multi_reduction <add>, %125, %cst_36 [1, 2] : vector<1x16x200xf32> to vector<1xf32>
    %127 = vector.shape_cast %126 : vector<1xf32> to vector<1x1x1xf32>
    %128 = vector.extract %127[0, 0, 0] : f32 from vector<1x1x1xf32>
    %129 = vector.broadcast %128 : f32 to vector<1x1xf32>
    %130 = arith.mulf %113, %113 : vector<16x200xf32>
    %131 = vector.shape_cast %130 : vector<16x200xf32> to vector<1x16x200xf32>
    %cst_37 = arith.constant dense<0.000000e+00> : vector<1xf32>
    %132 = vector.multi_reduction <add>, %131, %cst_37 [1, 2] : vector<1x16x200xf32> to vector<1xf32>
    %133 = vector.shape_cast %132 : vector<1xf32> to vector<1x1x1xf32>
    %134 = vector.extract %133[0, 0, 0] : f32 from vector<1x1x1xf32>
    %135 = vector.broadcast %134 : f32 to vector<1x1xf32>
    %136 = arith.mulf %111, %113 : vector<16x200xf32>
    %137 = vector.shape_cast %136 : vector<16x200xf32> to vector<1x16x200xf32>
    %cst_38 = arith.constant dense<0.000000e+00> : vector<1xf32>
    %138 = vector.multi_reduction <add>, %137, %cst_38 [1, 2] : vector<1x16x200xf32> to vector<1xf32>
    %139 = vector.shape_cast %138 : vector<1xf32> to vector<1x1x1xf32>
    %140 = vector.extract %139[0, 0, 0] : f32 from vector<1x1x1xf32>
    %141 = vector.broadcast %140 : f32 to vector<1x1xf32>
    %142 = arith.mulf %118, %118 : vector<1x1xf32>
    %cst_39 = arith.constant 2.000000e-03 : f32
    %143 = vector.broadcast %cst_39 : f32 to vector<1x1xf32>
    %144 = arith.mulf %142, %143 : vector<1x1xf32>
    %145 = arith.subf %129, %144 : vector<1x1xf32>
    %cst_40 = arith.constant 0.000000e+00 : f32
    %146 = vector.broadcast %cst_40 : f32 to vector<1x1xf32>
    %147 = arith.maximumf %145, %146 : vector<1x1xf32>
    %148 = arith.mulf %123, %123 : vector<1x1xf32>
    %cst_41 = arith.constant 2.000000e-03 : f32
    %149 = vector.broadcast %cst_41 : f32 to vector<1x1xf32>
    %150 = arith.mulf %148, %149 : vector<1x1xf32>
    %151 = arith.subf %135, %150 : vector<1x1xf32>
    %cst_42 = arith.constant 0.000000e+00 : f32
    %152 = vector.broadcast %cst_42 : f32 to vector<1x1xf32>
    %153 = arith.maximumf %151, %152 : vector<1x1xf32>
    %cst_43 = arith.constant 0.00200400804 : f32
    %154 = vector.broadcast %cst_43 : f32 to vector<1x1xf32>
    %155 = arith.mulf %147, %154 : vector<1x1xf32>
    %156 = math.sqrt %155 : vector<1x1xf32>
    %cst_44 = arith.constant 0.00200400804 : f32
    %157 = vector.broadcast %cst_44 : f32 to vector<1x1xf32>
    %158 = arith.mulf %153, %157 : vector<1x1xf32>
    %159 = math.sqrt %158 : vector<1x1xf32>
    %160 = arith.mulf %118, %123 : vector<1x1xf32>
    %cst_45 = arith.constant 2.000000e-03 : f32
    %161 = vector.broadcast %cst_45 : f32 to vector<1x1xf32>
    %162 = arith.mulf %160, %161 : vector<1x1xf32>
    %163 = arith.subf %141, %162 : vector<1x1xf32>
    %cst_46 = arith.constant 2.000000e-03 : f32
    %164 = vector.broadcast %cst_46 : f32 to vector<1x1xf32>
    %165 = arith.mulf %163, %164 : vector<1x1xf32>
    %166 = arith.mulf %156, %159 : vector<1x1xf32>
    %cst_47 = arith.constant 9.99999993E-9 : f32
    %167 = vector.broadcast %cst_47 : f32 to vector<1x1xf32>
    %168 = arith.addf %166, %167 : vector<1x1xf32>
    %169 = arith.divf %165, %168 : vector<1x1xf32>
    %cst_48 = arith.constant 9.99999993E-9 : f32
    %170 = vector.broadcast %cst_48 : f32 to vector<1x1xf32>
    %171 = arith.addf %89, %170 : vector<1x1xf32>
    %172 = arith.divf %89, %171 : vector<1x1xf32>
    %173 = math.log %172 : vector<1x1xf32>
    %cst_49 = arith.constant 0.434294492 : f32
    %174 = vector.broadcast %cst_49 : f32 to vector<1x1xf32>
    %175 = arith.mulf %173, %174 : vector<1x1xf32>
    %cst_50 = arith.constant 9.99999993E-9 : f32
    %176 = vector.broadcast %cst_50 : f32 to vector<1x1xf32>
    %177 = arith.addf %89, %176 : vector<1x1xf32>
    %178 = arith.divf %156, %177 : vector<1x1xf32>
    %179 = math.log %178 : vector<1x1xf32>
    %cst_51 = arith.constant 0.434294492 : f32
    %180 = vector.broadcast %cst_51 : f32 to vector<1x1xf32>
    %181 = arith.mulf %179, %180 : vector<1x1xf32>
    %cst_52 = arith.constant 2.000000e+00 : f32
    %182 = vector.broadcast %cst_52 : f32 to vector<1x1xf32>
    %183 = arith.mulf %182, %102 : vector<1x1xf32>
    %184 = arith.addf %183, %169 : vector<1x1xf32>
    %cst_53 = arith.constant 4.01219695E-5 : f32
    %185 = vector.broadcast %cst_53 : f32 to vector<1x1xf32>
    %186 = arith.mulf %13, %185 : vector<1x1xf32>
    %187 = arith.addf %175, %181 : vector<1x1xf32>
    %cst_54 = arith.constant 1.000000e-01 : f32
    %188 = vector.broadcast %cst_54 : f32 to vector<1x1xf32>
    %189 = arith.mulf %188, %187 : vector<1x1xf32>
    %cst_55 = arith.constant 5.000000e-01 : f32
    %190 = vector.broadcast %cst_55 : f32 to vector<1x1xf32>
    %191 = arith.mulf %189, %190 : vector<1x1xf32>
    %192 = arith.subf %186, %191 : vector<1x1xf32>
    %cst_56 = arith.constant 5.000000e-02 : f32
    %193 = vector.broadcast %cst_56 : f32 to vector<1x1xf32>
    %194 = arith.mulf %193, %184 : vector<1x1xf32>
    %cst_57 = arith.constant 5.000000e-01 : f32
    %195 = vector.broadcast %cst_57 : f32 to vector<1x1xf32>
    %196 = arith.mulf %194, %195 : vector<1x1xf32>
    %197 = arith.subf %192, %196 : vector<1x1xf32>
    %c0_58 = arith.constant 0 : index
    %c0_59 = arith.constant 0 : index
    %c0_60 = arith.constant 0 : index
    %198 = vector.load %arg7[%c0_58, %c0_59, %c0_60] : memref<1x1x1xf32, #tpu.memory_space<vmem>>, vector<1x1x1xf32>
    %199 = vector.shape_cast %198 : vector<1x1x1xf32> to vector<1x1xf32>
    %200 = vector.shape_cast %197 : vector<1x1xf32> to vector<1x1x1xf32>
    tpu.vector_store %arg7[%c0_58, %c0_59, %c0_60], %200 {strides = array<i32>} : memref<1x1x1xf32, #tpu.memory_space<vmem>>, vector<1x1x1xf32>,
    return
  }
  func.func @transform_0(%arg0: i32, %arg1: memref<2xi32, #tpu.memory_space<smem>>, %arg2: memref<2xi32, #tpu.memory_space<smem>>) -> (i32, i32, i32) {
    %c0_i32 = arith.constant 0 : i32
    %c0_i32_0 = arith.constant 0 : i32
    %c0_i32_1 = arith.constant 0 : i32
    return %arg0, %c0_i32, %c0_i32_0 : i32, i32, i32
  }
  func.func @transform_1(%arg0: i32, %arg1: memref<2xi32, #tpu.memory_space<smem>>, %arg2: memref<2xi32, #tpu.memory_space<smem>>) -> (i32, i32, i32) {
    %c0_i32 = arith.constant 0 : i32
    %c0_i32_0 = arith.constant 0 : i32
    %c0_i32_1 = arith.constant 0 : i32
    return %arg0, %c0_i32, %c0_i32_0 : i32, i32, i32
  }
  func.func @transform_2(%arg0: i32, %arg1: memref<2xi32, #tpu.memory_space<smem>>, %arg2: memref<2xi32, #tpu.memory_space<smem>>) -> (i32, i32, i32) {
    %c0_i32 = arith.constant 0 : i32
    %c0_i32_0 = arith.constant 0 : i32
    %c0_i32_1 = arith.constant 0 : i32
    return %arg0, %c0_i32, %c0_i32_0 : i32, i32, i32
  }
  func.func @transform_3(%arg0: i32, %arg1: memref<2xi32, #tpu.memory_space<smem>>, %arg2: memref<2xi32, #tpu.memory_space<smem>>) -> (i32, i32) {
    %c0_i32 = arith.constant 0 : i32
    %c0_i32_0 = arith.constant 0 : i32
    %c0_i32_1 = arith.constant 0 : i32
    return %c0_i32, %c0_i32_0 : i32, i32
  }
  func.func @transform_4(%arg0: i32, %arg1: memref<2xi32, #tpu.memory_space<smem>>, %arg2: memref<2xi32, #tpu.memory_space<smem>>) -> (i32, i32, i32) {
    %c0_i32 = arith.constant 0 : i32
    %c0_i32_0 = arith.constant 0 : i32
    %c0_i32_1 = arith.constant 0 : i32
    return %arg0, %c0_i32, %c0_i32_0 : i32, i32, i32
  }
}

</mosaic_0001>

<llo_original>
// kernel: custom_loss.1
$region0: #{custom_loss.1}
  #allocation0 [shape = 'u32[]', space=smem, size = 0x4, offset = 0x4, fixed_abs, tag = 'smem constant byte address 0x4 - core index']
  #allocation1 [shape = 'u32[144,128]{1,0:T(1,128)}', space=vmem, size = 0x12000, scoped, tag = 'internal scratch']
  #allocation2 [shape = 's32[1]{0}', space=sflag, size = 0x4, scoped, tag = 'scoped memory for custom_loss.1']
  #allocation3 [shape = 'u8[512]{0}', space=smem, size = 0x200, scoped, tag = 'prefetched SMEM operand 0']
  #allocation4 [shape = 'u8[512]{0}', space=smem, size = 0x200, scoped, tag = 'prefetched SMEM operand 1']
  %s0 = inlined_call_operand.vmem [shape: s32[2], index: 0, kind: input, shape index: {}]
  %s1 = inlined_call_operand.vmem [shape: s32[2], index: 1, kind: input, shape index: {}]
  %s2 = inlined_call_operand.vmem [shape: f32[2,62,201], index: 2, kind: input, shape index: {}]
  %s3 = inlined_call_operand.vmem [shape: f32[2,62,201], index: 3, kind: input, shape index: {}]
  %s4 = inlined_call_operand.vmem [shape: f32[2,62,201], index: 4, kind: input, shape index: {}]
  %s5 = inlined_call_operand.vmem [shape: f32[32,62], index: 5, kind: input, shape index: {}]
  %s6 = inlined_call_operand.vmem [shape: f32[2,1,1], index: 6, kind: output, shape index: {}]
  %s7 = sld [smem:[#allocation0]]
  $region49: #{custom_loss.1} parent=0
    _
  %s9 = ssub.s32 1, %s7
  %s10 = scalar_select 0, %s9, %s7
  %s11 = sshll.u32 %s0, 4
  %s12 = int_to_ptr.vmem [resolvable:$true] %s11
  %14 = dma.vmem_to_smem %s12, 16, [#allocation3], [#allocation2]
  %s15 = sshll.u32 %s1, 4
  %s16 = int_to_ptr.vmem [resolvable:$true] %s15
  %18 = dma.vmem_to_smem %s16, 16, [#allocation4], [#allocation2]
  %19 = dma.done [#allocation2], 32
  %20 = sfence
  loop: start=0, step=1, limit=4
  $region2: #{custom_loss.1} parent=0 // loop_pre_header
    _
  $region3: #{custom_loss.1} parent=0 // loop_header
    %s22 = sphi 0, %s26
    %p23 = scmp.ge.s32.totalorder %s22, 4
    %s32 = sphi 0, %s34
    %s35 = sphi 0, %s32
    %s36 = sphi 0, %s35
    %s52 = sphi 0, %s36
    %s58 = sphi 0, %s60
    %s61 = sphi 0, %s58
    %s62 = sphi 0, %s61
    %s78 = sphi 0, %s62
    %s84 = sphi 0, %s86
    %s87 = sphi 0, %s84
    %s88 = sphi 0, %s87
    %s104 = sphi 0, %s88
    %s108 = sphi 0, %s108
    %s110 = sphi 0, %s108
    %s111 = sphi 0, %s110
    %s125 = sphi 0, %s111
    %s131 = sphi 0, %s133
    %s134 = sphi 0, %s131
    %s135 = sphi 0, %s134
    %s151 = sphi 0, %s135
  $region4: #{custom_loss.1} parent=0 // loop_header_branch
    %25 = sbr.rel (%p23) target = $region8
  $region5: #{custom_loss.1} parent=0 // loop_body
    %s27 = ssub.s32 %s22, 1
    %s28 = ssub.s32 %s22, 2
    %s29 = sadd.s32 %s22, 1
    %s30 = ssub.s32 %s22, %s29
    %p31 = scmp.eq.s32.totalorder %s30, 0
    %s33 = sadd.s32 %s32, 1
    %s34 = scalar_select %p31, %s32, %s33
    %p37 = pneg %p31
    %p38 = scmp.eq.s32.totalorder %s22, 1
    %p39 = por %p37, %p38
    %p40 = scmp.ne.s32.totalorder %s32, %s35
    %p41 = scmp.eq.s32.totalorder %s22, 0
    %p42 = por %p40, %p41
    %p43 = scmp.ne.s32.totalorder %s32, %s35
    %p44 = scmp.eq.s32.totalorder %s27, 1
    %p45 = por %p43, %p44
    %p46 = scmp.ne.s32.totalorder %s35, %s36
    %p47 = scmp.eq.s32.totalorder %s27, 0
    %p48 = por %p46, %p47
    %p49 = scmp.ne.s32.totalorder %s35, %s36
    %p50 = scmp.eq.s32.totalorder %s28, 1
    %p51 = por %p49, %p50
    %p53 = scmp.ne.s32.totalorder %s36, %s52
    %p54 = scmp.eq.s32.totalorder %s28, 0
    %p55 = por %p53, %p54
    %s56 = ssub.s32 %s22, %s29
    %p57 = scmp.eq.s32.totalorder %s56, 0
    %s59 = sadd.s32 %s58, 1
    %s60 = scalar_select %p57, %s58, %s59
    %p63 = pneg %p57
    %p64 = scmp.eq.s32.totalorder %s22, 1
    %p65 = por %p63, %p64
    %p66 = scmp.ne.s32.totalorder %s58, %s61
    %p67 = scmp.eq.s32.totalorder %s22, 0
    %p68 = por %p66, %p67
    %p69 = scmp.ne.s32.totalorder %s58, %s61
    %p70 = scmp.eq.s32.totalorder %s27, 1
    %p71 = por %p69, %p70
    %p72 = scmp.ne.s32.totalorder %s61, %s62
    %p73 = scmp.eq.s32.totalorder %s27, 0
    %p74 = por %p72, %p73
    %p75 = scmp.ne.s32.totalorder %s61, %s62
    %p76 = scmp.eq.s32.totalorder %s28, 1
    %p77 = por %p75, %p76
    %p79 = scmp.ne.s32.totalorder %s62, %s78
    %p80 = scmp.eq.s32.totalorder %s28, 0
    %p81 = por %p79, %p80
    %s82 = ssub.s32 %s22, %s29
    %p83 = scmp.eq.s32.totalorder %s82, 0
    %s85 = sadd.s32 %s84, 1
    %s86 = scalar_select %p83, %s84, %s85
    %p89 = pneg %p83
    %p90 = scmp.eq.s32.totalorder %s22, 1
    %p91 = por %p89, %p90
    %p92 = scmp.ne.s32.totalorder %s84, %s87
    %p93 = scmp.eq.s32.totalorder %s22, 0
    %p94 = por %p92, %p93
    %p95 = scmp.ne.s32.totalorder %s84, %s87
    %p96 = scmp.eq.s32.totalorder %s27, 1
    %p97 = por %p95, %p96
    %p98 = scmp.ne.s32.totalorder %s87, %s88
    %p99 = scmp.eq.s32.totalorder %s27, 0
    %p100 = por %p98, %p99
    %p101 = scmp.ne.s32.totalorder %s87, %s88
    %p102 = scmp.eq.s32.totalorder %s28, 1
    %p103 = por %p101, %p102
    %p105 = scmp.ne.s32.totalorder %s88, %s104
    %p106 = scmp.eq.s32.totalorder %s28, 0
    %p107 = por %p105, %p106
    %s109 = sadd.s32 %s108, 1
    %p112 = scmp.eq.s32.totalorder %s22, 1
    %p113 = scmp.ne.s32.totalorder %s108, %s110
    %p114 = scmp.eq.s32.totalorder %s22, 0
    %p115 = por %p113, %p114
    %p116 = scmp.ne.s32.totalorder %s108, %s110
    %p117 = scmp.eq.s32.totalorder %s27, 1
    %p118 = por %p116, %p117
    %p119 = scmp.ne.s32.totalorder %s110, %s111
    %p120 = scmp.eq.s32.totalorder %s27, 0
    %p121 = por %p119, %p120
    %p122 = scmp.ne.s32.totalorder %s110, %s111
    %p123 = scmp.eq.s32.totalorder %s28, 1
    %p124 = por %p122, %p123
    %p126 = scmp.ne.s32.totalorder %s111, %s125
    %p127 = scmp.eq.s32.totalorder %s28, 0
    %p128 = por %p126, %p127
    %s129 = ssub.s32 %s22, %s29
    %p130 = scmp.eq.s32.totalorder %s129, 0
    %s132 = sadd.s32 %s131, 1
    %s133 = scalar_select %p130, %s131, %s132
    %p136 = pneg %p130
    %p137 = scmp.eq.s32.totalorder %s22, 1
    %p138 = por %p136, %p137
    %p139 = scmp.ne.s32.totalorder %s131, %s134
    %p140 = scmp.eq.s32.totalorder %s22, 0
    %p141 = por %p139, %p140
    %p142 = scmp.ne.s32.totalorder %s131, %s134
    %p143 = scmp.eq.s32.totalorder %s27, 1
    %p144 = por %p142, %p143
    %p145 = scmp.ne.s32.totalorder %s134, %s135
    %p146 = scmp.eq.s32.totalorder %s27, 0
    %p147 = por %p145, %p146
    %p148 = scmp.ne.s32.totalorder %s134, %s135
    %p149 = scmp.eq.s32.totalorder %s28, 1
    %p150 = por %p148, %p149
    %p152 = scmp.ne.s32.totalorder %s135, %s151
    %p153 = scmp.eq.s32.totalorder %s28, 0
    %p154 = por %p152, %p153
    %p155 = scmp.le.s32.totalorder 1, %s22
    %p156 = scmp.lt.s32.totalorder %s22, 3
    %p157 = pnand %p155, %p156
    %p158 = pneg %p157
    // Predicated region
    $region9: #{custom_loss.1} parent=5 // pred_check
      _
    $region10: #{custom_loss.1} parent=5 // pred_check_branch
      %160 = sbr.rel (%p157) target = $region12
    $region11: #{custom_loss.1} parent=5 // pred_region
      %s161 = ssub.s32 %s22, 1
      // Predicated region
      $region13: #{custom_loss.1} parent=11 // pred_check
        %p162 = pneg %p121
      $region14: #{custom_loss.1} parent=11 // pred_check_branch
        %164 = sbr.rel (%p162) target = $region16
      $region15: #{custom_loss.1} parent=11 // pred_region
        _
      $region16: #{custom_loss.1} parent=11 // pred_fallthru
        _
    $region12: #{custom_loss.1} parent=5 // pred_fallthru
      _
    %p165 = scmp.lt.s32.totalorder %s22, 2
    // Predicated region
    $region17: #{custom_loss.1} parent=5 // pred_check
      %p166 = pneg %p165
    $region18: #{custom_loss.1} parent=5 // pred_check_branch
      %168 = sbr.rel (%p166) target = $region20
    $region19: #{custom_loss.1} parent=5 // pred_region
      // Predicated region
      $region21: #{custom_loss.1} parent=19 // pred_check
        %p169 = pneg %p42
      $region22: #{custom_loss.1} parent=19 // pred_check_branch
        %171 = sbr.rel (%p169) target = $region24
      $region23: #{custom_loss.1} parent=19 // pred_region
        %p172 = scmp.lt.s32.totalorder %s22, 1
        %s173 = scalar_select %p172, %s22, 1
        %s174 = smul.addr %s173, 16
        %s175 = smul.addr %s174, 8
        %s176 = scalar_lea.vmem %s2, %s175
      $region24: #{custom_loss.1} parent=19 // pred_fallthru
        _
      // Predicated region
      $region25: #{custom_loss.1} parent=19 // pred_check
        %p177 = pneg %p68
      $region26: #{custom_loss.1} parent=19 // pred_check_branch
        %179 = sbr.rel (%p177) target = $region28
      $region27: #{custom_loss.1} parent=19 // pred_region
        %p180 = scmp.lt.s32.totalorder %s22, 1
        %s181 = scalar_select %p180, %s22, 1
        %s182 = smul.addr %s181, 16
        %s183 = smul.addr %s182, 8
        %s184 = scalar_lea.vmem %s3, %s183
      $region28: #{custom_loss.1} parent=19 // pred_fallthru
        _
      // Predicated region
      $region29: #{custom_loss.1} parent=19 // pred_check
        %p185 = pneg %p94
      $region30: #{custom_loss.1} parent=19 // pred_check_branch
        %187 = sbr.rel (%p185) target = $region32
      $region31: #{custom_loss.1} parent=19 // pred_region
        %p188 = scmp.lt.s32.totalorder %s22, 1
        %s189 = scalar_select %p188, %s22, 1
        %s190 = smul.addr %s189, 16
        %s191 = smul.addr %s190, 8
        %s192 = scalar_lea.vmem %s4, %s191
      $region32: #{custom_loss.1} parent=19 // pred_fallthru
        _
    $region20: #{custom_loss.1} parent=5 // pred_fallthru
      _
    %p193 = scmp.le.s32.totalorder 1, %s22
    %p194 = scmp.lt.s32.totalorder %s22, 3
    %p195 = pnand %p193, %p194
    %p196 = pneg %p195
    // Predicated region
    $region33: #{custom_loss.1} parent=5 // pred_check
      _
    $region34: #{custom_loss.1} parent=5 // pred_check_branch
      %198 = sbr.rel (%p195) target = $region36
    $region35: #{custom_loss.1} parent=5 // pred_region
      %s199 = ssub.s32 %s22, 1
      %p200 = scmp.lt.s32.totalorder %s27, 1
      %s201 = scalar_select %p200, %s27, 1
      %s202 = smul.addr %s201, 16
      %s203 = smul.addr %s202, 8
      %s204 = scalar_lea.vmem %s2, %s203
      %p205 = pneg %p48
      %p206 = pneg %p45
      %p207 = scmp.lt.s32.totalorder %s27, 1
      %s208 = scalar_select %p207, %s27, 1
      %s209 = smul.addr %s208, 16
      %s210 = smul.addr %s209, 8
      %s211 = scalar_lea.vmem %s3, %s210
      %p212 = pneg %p74
      %p213 = pneg %p71
      %p214 = scmp.lt.s32.totalorder %s27, 1
      %s215 = scalar_select %p214, %s27, 1
      %s216 = smul.addr %s215, 16
      %s217 = smul.addr %s216, 8
      %s218 = scalar_lea.vmem %s4, %s217
      %p219 = pneg %p100
      %p220 = pneg %p97
      %p221 = pneg %p121
      %p222 = pneg %p118
      %p223 = pneg %p147
      %p224 = pneg %p144
      %p225 = scmp.lt.s32.totalorder %s27, 1
      %s226 = scalar_select %p225, %s27, 1
      %s227 = scalar_lea.vmem %s6, %s226
      %p228 = scmp.lt.s32.totalorder %s27, 1
      %s229 = scalar_select %p228, %s27, 1
      %s230 = smul.addr %s229, 16
      %s231 = smul.addr %s230, 8
      %s232 = scalar_lea.vmem %s2, %s231
      %p233 = scmp.lt.s32.totalorder %s27, 1
      %s234 = scalar_select %p233, %s27, 1
      %s235 = smul.addr %s234, 16
      %s236 = smul.addr %s235, 8
      %s237 = scalar_lea.vmem %s3, %s236
      %p238 = scmp.lt.s32.totalorder %s27, 1
      %s239 = scalar_select %p238, %s27, 1
      %s240 = smul.addr %s239, 16
      %s241 = smul.addr %s240, 8
      %s242 = scalar_lea.vmem %s4, %s241
      %p243 = scmp.lt.s32.totalorder %s27, 1
      %s244 = scalar_select %p243, %s27, 1
      %s245 = scalar_lea.vmem %s6, %s244
      %v246 = vld [vmem:[%s5] sm:$0xff]
      %v247 = vld [vmem:[%s5 + $0x8] sm:$0xff]
      %v248 = vld [vmem:[%s5 + $0x10] sm:$0xff]
      %v249 = vld [vmem:[%s5 + $0x18] sm:$0xff]
      %v250 = vld [vmem:[%s232] sm:$0xff]
      %v251 = vld [vmem:[%s232 + $0x8] sm:$0xff]
      %v252 = vld [vmem:[%s232 + $0x10] sm:$0xff]
      %v253 = vld [vmem:[%s232 + $0x18] sm:$0xff]
      %v254 = vld [vmem:[%s232 + $0x20] sm:$0xff]
      %v255 = vld [vmem:[%s232 + $0x28] sm:$0xff]
      %v256 = vld [vmem:[%s232 + $0x30] sm:$0xff]
      %v257 = vld [vmem:[%s232 + $0x38] sm:$0xff]
      %v258 = vld [vmem:[%s232 + $0x40] sm:$0xff]
      %v259 = vld [vmem:[%s232 + $0x48] sm:$0xff]
      %v260 = vld [vmem:[%s232 + $0x50] sm:$0xff]
      %v261 = vld [vmem:[%s232 + $0x58] sm:$0xff]
      %v262 = vld [vmem:[%s232 + $0x60] sm:$0xff]
      %v263 = vld [vmem:[%s232 + $0x68] sm:$0xff]
      %v264 = vld [vmem:[%s232 + $0x70] sm:$0x3f]
      %v265 = vld [vmem:[%s232 + $0x78] sm:$0x3f]
      %v266 = vld [vmem:[%s237] sm:$0xff]
      %v267 = vld [vmem:[%s237 + $0x8] sm:$0xff]
      %v268 = vld [vmem:[%s237 + $0x10] sm:$0xff]
      %v269 = vld [vmem:[%s237 + $0x18] sm:$0xff]
      %v270 = vld [vmem:[%s237 + $0x20] sm:$0xff]
      %v271 = vld [vmem:[%s237 + $0x28] sm:$0xff]
      %v272 = vld [vmem:[%s237 + $0x30] sm:$0xff]
      %v273 = vld [vmem:[%s237 + $0x38] sm:$0xff]
      %v274 = vld [vmem:[%s237 + $0x40] sm:$0xff]
      %v275 = vld [vmem:[%s237 + $0x48] sm:$0xff]
      %v276 = vld [vmem:[%s237 + $0x50] sm:$0xff]
      %v277 = vld [vmem:[%s237 + $0x58] sm:$0xff]
      %v278 = vld [vmem:[%s237 + $0x60] sm:$0xff]
      %v279 = vld [vmem:[%s237 + $0x68] sm:$0xff]
      %v280 = vld [vmem:[%s237 + $0x70] sm:$0x3f]
      %v281 = vld [vmem:[%s237 + $0x78] sm:$0x3f]
      %v282 = vld [vmem:[%s242] sm:$0xff]
      %v283 = vld [vmem:[%s242 + $0x8] sm:$0xff]
      %v284 = vld [vmem:[%s242 + $0x10] sm:$0xff]
      %v285 = vld [vmem:[%s242 + $0x18] sm:$0xff]
      %v286 = vld [vmem:[%s242 + $0x20] sm:$0xff]
      %v287 = vld [vmem:[%s242 + $0x28] sm:$0xff]
      %v288 = vld [vmem:[%s242 + $0x30] sm:$0xff]
      %v289 = vld [vmem:[%s242 + $0x38] sm:$0xff]
      %v290 = vld [vmem:[%s242 + $0x40] sm:$0xff]
      %v291 = vld [vmem:[%s242 + $0x48] sm:$0xff]
      %v292 = vld [vmem:[%s242 + $0x50] sm:$0xff]
      %v293 = vld [vmem:[%s242 + $0x58] sm:$0xff]
      %v294 = vld [vmem:[%s242 + $0x60] sm:$0xff]
      %v295 = vld [vmem:[%s242 + $0x68] sm:$0xff]
      %v296 = vld [vmem:[%s242 + $0x70] sm:$0x3f]
      %v297 = vld [vmem:[%s242 + $0x78] sm:$0x3f]
      %v298 = vsub.f32 %v250, %v266
      %v299 = vsub.f32 %v251, %v267
      %v300 = vsub.f32 %v252, %v268
      %v301 = vsub.f32 %v253, %v269
      %v302 = vsub.f32 %v254, %v270
      %v303 = vsub.f32 %v255, %v271
      %v304 = vsub.f32 %v256, %v272
      %v305 = vsub.f32 %v257, %v273
      %v306 = vsub.f32 %v258, %v274
      %v307 = vsub.f32 %v259, %v275
      %v308 = vsub.f32 %v260, %v276
      %v309 = vsub.f32 %v261, %v277
      %v310 = vsub.f32 %v262, %v278
      %v311 = vsub.f32 %v263, %v279
      %v312 = vsub.f32 %v264, %v280
      %v313 = vsub.f32 %v265, %v281
      %v314 = vmul.f32 %v298, %v298
      %v315 = vmul.f32 %v299, %v299
      %v316 = vmul.f32 %v300, %v300
      %v317 = vmul.f32 %v301, %v301
      %v318 = vmul.f32 %v302, %v302
      %v319 = vmul.f32 %v303, %v303
      %v320 = vmul.f32 %v304, %v304
      %v321 = vmul.f32 %v305, %v305
      %v322 = vmul.f32 %v306, %v306
      %v323 = vmul.f32 %v307, %v307
      %v324 = vmul.f32 %v308, %v308
      %v325 = vmul.f32 %v309, %v309
      %v326 = vmul.f32 %v310, %v310
      %v327 = vmul.f32 %v311, %v311
      %v328 = vmul.f32 %v312, %v312
      %v329 = vmul.f32 %v313, %v313
      %vm330 = vcmask 596992
      %v331 = vsel %vm330, %v315, 0.0
      %v332 = vadd.f32 %v314, %v331
      %v333 = vadd.f32 %v332, %v316
      %v334 = vsel %vm330, %v317, 0.0
      %v335 = vadd.f32 %v333, %v334
      %v336 = vadd.f32 %v335, %v318
      %v337 = vsel %vm330, %v319, 0.0
      %v338 = vadd.f32 %v336, %v337
      %v339 = vadd.f32 %v338, %v320
      %v340 = vsel %vm330, %v321, 0.0
      %v341 = vadd.f32 %v339, %v340
      %v342 = vadd.f32 %v341, %v322
      %v343 = vsel %vm330, %v323, 0.0
      %v344 = vadd.f32 %v342, %v343
      %v345 = vadd.f32 %v344, %v324
      %v346 = vsel %vm330, %v325, 0.0
      %v347 = vadd.f32 %v345, %v346
      %v348 = vadd.f32 %v347, %v326
      %v349 = vsel %vm330, %v327, 0.0
      %v350 = vadd.f32 %v348, %v349
      %vm351 = vcmask 1045504
      %v352 = vsel %vm351, %v328, 0.0
      %v353 = vadd.f32 %v350, %v352
      %vm354 = vcmask 594944
      %v355 = vsel %vm354, %v329, 0.0
      %v356 = vadd.f32 %v353, %v355
      %357 = vadd.xlane.f32.xlu0 %v356
      %v358 = vpop.xlane.xlu0 %357
      %v359 = vrot.slane %v358, 4
      %v360 = vadd.f32 %v358, %v359
      %v361 = vrot.slane %v360, 2
      %v362 = vadd.f32 %v360, %v361
      %v363 = vrot.slane %v362, 1
      %v364 = vadd.f32 %v362, %v363
      %s365 = vtos %v364
      %v366 = vstv %s365
      %v367 = vmul.f32 %v282, %v250
      %v368 = vmul.f32 %v283, %v251
      %v369 = vmul.f32 %v284, %v252
      %v370 = vmul.f32 %v285, %v253
      %v371 = vmul.f32 %v286, %v254
      %v372 = vmul.f32 %v287, %v255
      %v373 = vmul.f32 %v288, %v256
      %v374 = vmul.f32 %v289, %v257
      %v375 = vmul.f32 %v290, %v258
      %v376 = vmul.f32 %v291, %v259
      %v377 = vmul.f32 %v292, %v260
      %v378 = vmul.f32 %v293, %v261
      %v379 = vmul.f32 %v294, %v262
      %v380 = vmul.f32 %v295, %v263
      %v381 = vmul.f32 %v296, %v264
      %v382 = vmul.f32 %v297, %v265
      %vm383 = vcmask 506880
      %v385 = vsel %vm383, %v246, 0
      %v388 = vsel %vm383, %v247, 0
      %v391 = vsel %vm383, %v248, 0
      %v394 = vsel %vm383, %v249, 0
      %v397 = vsel %vm351, %v381, 0
      %v400 = vsel %vm351, %v382, 0
      %402 = vmatprep.subr.mxu0 0.0
      %403 = vmatpush1.msra.mxu0 0.0
      %404 = vmatprep.subr.mxu0 0.0
      %405 = vmatpush1.msra.mxu0 0.0
      %406 = vmatprep.subr.mxu0 0.0
      %407 = vmatpush1.msra.mxu0 0.0
      %408 = vmatprep.subr.mxu0 0.0
      %409 = vmatpush1.msra.mxu0 0.0
      %410 = vmatprep.subr.mxu0 0.0
      %411 = vmatpush1.msra.mxu0 0.0
      %412 = vmatprep.subr.mxu0 0.0
      %413 = vmatpush1.msra.mxu0 0.0
      %414 = vmatprep.subr.mxu0 0.0
      %415 = vmatpush1.msra.mxu0 0.0
      %416 = vmatprep.subr.mxu0 0.0
      %417 = vmatpush1.msra.mxu0 0.0
      %418 = vmatprep.subr.mxu0 %v400
      %419 = vmatpush1.msra.mxu0 %v397
      %420 = vmatprep.subr.mxu0 %v380
      %421 = vmatpush1.msra.mxu0 %v379
      %422 = vmatprep.subr.mxu0 %v378
      %423 = vmatpush1.msra.mxu0 %v377
      %424 = vmatprep.subr.mxu0 %v376
      %425 = vmatpush1.msra.mxu0 %v375
      %426 = vmatprep.subr.mxu0 %v374
      %427 = vmatpush1.msra.mxu0 %v373
      %428 = vmatprep.subr.mxu0 %v372
      %429 = vmatpush1.msra.mxu0 %v371
      %430 = vmatprep.subr.mxu0 %v370
      %431 = vmatpush1.msra.mxu0 %v369
      %432 = vmatprep.subr.mxu0 %v368
      %433 = vmatpush1.msra.mxu0 %v367
      %434 = vmatprep.subr.mxu0 0.0
      %435 = vmatpush2.msra.mxu0 0.0
      %436 = vmatprep.subr.mxu0 0.0
      %437 = vmatpush2.msra.mxu0 0.0
      %438 = vmatprep.subr.mxu0 0.0
      %439 = vmatpush2.msra.mxu0 0.0
      %440 = vmatprep.subr.mxu0 0.0
      %441 = vmatpush2.msra.mxu0 0.0
      %442 = vmatprep.subr.mxu0 0.0
      %443 = vmatpush2.msra.mxu0 0.0
      %444 = vmatprep.subr.mxu0 0.0
      %445 = vmatpush2.msra.mxu0 0.0
      %446 = vmatprep.subr.mxu0 0.0
      %447 = vmatpush2.msra.mxu0 0.0
      %448 = vmatprep.subr.mxu0 0.0
      %449 = vmatpush2.msra.mxu0 0.0
      %450 = vmatprep.subr.mxu0 0.0
      %451 = vmatpush2.msra.mxu0 0.0
      %452 = vmatprep.subr.mxu0 0.0
      %453 = vmatpush2.msra.mxu0 0.0
      %454 = vmatprep.subr.mxu0 0.0
      %455 = vmatpush2.msra.mxu0 0.0
      %456 = vmatprep.subr.mxu0 0.0
      %457 = vmatpush2.msra.mxu0 0.0
      %458 = vmatprep.subr.mxu0 0.0
      %459 = vmatpush2.msra.mxu0 0.0
      %460 = vmatprep.subr.mxu0 0.0
      %461 = vmatpush2.msra.mxu0 0.0
      %462 = vmatprep.subr.mxu0 0.0
      %463 = vmatpush2.msra.mxu0 0.0
      %464 = vmatprep.subr.mxu0 0.0
      %465 = vmatpush2.msra.mxu0 0.0
      %466 = vmatprep.mubr.f32.mxu0 0.0
      %467 = vmatmul.mubr.f32.gmra.mxu0 %v385
      %v468 = vpop.f32.mrf.mxu0
      %v469 = vadd.f32 0.0, %v468
      %v470 = vpop.f32.mrf.mxu0
      %v471 = vadd.f32 0.0, %v470
      %472 = vmatprep.mubr.f32.mxu0 0.0
      %473 = vmatmul.mubr.f32.gmra.mxu0 %v388
      %v474 = vpop.f32.mrf.mxu0
      %v475 = vadd.f32 0.0, %v474
      %v476 = vpop.f32.mrf.mxu0
      %v477 = vadd.f32 0.0, %v476
      %478 = vmatprep.mubr.f32.mxu0 0.0
      %479 = vmatmul.mubr.f32.gmra.mxu0 %v391
      %v480 = vpop.f32.mrf.mxu0
      %v481 = vadd.f32 0.0, %v480
      %v482 = vpop.f32.mrf.mxu0
      %v483 = vadd.f32 0.0, %v482
      %484 = vmatprep.mubr.f32.mxu0 0.0
      %485 = vmatmul.mubr.f32.gmra.mxu0 %v394
      %v486 = vpop.f32.mrf.mxu0
      %v487 = vadd.f32 0.0, %v486
      %v488 = vpop.f32.mrf.mxu0
      %v489 = vadd.f32 0.0, %v488
      %490 = vdwg.mxu0
      %v492 = vsel %vm351, %v296, 0
      %v495 = vsel %vm351, %v297, 0
      %497 = vmatprep.subr.mxu0 0.0
      %498 = vmatpush1.msra.mxu0 0.0
      %499 = vmatprep.subr.mxu0 0.0
      %500 = vmatpush1.msra.mxu0 0.0
      %501 = vmatprep.subr.mxu0 0.0
      %502 = vmatpush1.msra.mxu0 0.0
      %503 = vmatprep.subr.mxu0 0.0
      %504 = vmatpush1.msra.mxu0 0.0
      %505 = vmatprep.subr.mxu0 0.0
      %506 = vmatpush1.msra.mxu0 0.0
      %507 = vmatprep.subr.mxu0 0.0
      %508 = vmatpush1.msra.mxu0 0.0
      %509 = vmatprep.subr.mxu0 0.0
      %510 = vmatpush1.msra.mxu0 0.0
      %511 = vmatprep.subr.mxu0 0.0
      %512 = vmatpush1.msra.mxu0 0.0
      %513 = vmatprep.subr.mxu0 %v495
      %514 = vmatpush1.msra.mxu0 %v492
      %515 = vmatprep.subr.mxu0 %v295
      %516 = vmatpush1.msra.mxu0 %v294
      %517 = vmatprep.subr.mxu0 %v293
      %518 = vmatpush1.msra.mxu0 %v292
      %519 = vmatprep.subr.mxu0 %v291
      %520 = vmatpush1.msra.mxu0 %v290
      %521 = vmatprep.subr.mxu0 %v289
      %522 = vmatpush1.msra.mxu0 %v288
      %523 = vmatprep.subr.mxu0 %v287
      %524 = vmatpush1.msra.mxu0 %v286
      %525 = vmatprep.subr.mxu0 %v285
      %526 = vmatpush1.msra.mxu0 %v284
      %527 = vmatprep.subr.mxu0 %v283
      %528 = vmatpush1.msra.mxu0 %v282
      %529 = vmatprep.subr.mxu0 0.0
      %530 = vmatpush2.msra.mxu0 0.0
      %531 = vmatprep.subr.mxu0 0.0
      %532 = vmatpush2.msra.mxu0 0.0
      %533 = vmatprep.subr.mxu0 0.0
      %534 = vmatpush2.msra.mxu0 0.0
      %535 = vmatprep.subr.mxu0 0.0
      %536 = vmatpush2.msra.mxu0 0.0
      %537 = vmatprep.subr.mxu0 0.0
      %538 = vmatpush2.msra.mxu0 0.0
      %539 = vmatprep.subr.mxu0 0.0
      %540 = vmatpush2.msra.mxu0 0.0
      %541 = vmatprep.subr.mxu0 0.0
      %542 = vmatpush2.msra.mxu0 0.0
      %543 = vmatprep.subr.mxu0 0.0
      %544 = vmatpush2.msra.mxu0 0.0
      %545 = vmatprep.subr.mxu0 0.0
      %546 = vmatpush2.msra.mxu0 0.0
      %547 = vmatprep.subr.mxu0 0.0
      %548 = vmatpush2.msra.mxu0 0.0
      %549 = vmatprep.subr.mxu0 0.0
      %550 = vmatpush2.msra.mxu0 0.0
      %551 = vmatprep.subr.mxu0 0.0
      %552 = vmatpush2.msra.mxu0 0.0
      %553 = vmatprep.subr.mxu0 0.0
      %554 = vmatpush2.msra.mxu0 0.0
      %555 = vmatprep.subr.mxu0 0.0
      %556 = vmatpush2.msra.mxu0 0.0
      %557 = vmatprep.subr.mxu0 0.0
      %558 = vmatpush2.msra.mxu0 0.0
      %559 = vmatprep.subr.mxu0 0.0
      %560 = vmatpush2.msra.mxu0 0.0
      %561 = vmatprep.mubr.f32.mxu0 0.0
      %562 = vmatmul.mubr.f32.gmra.mxu0 %v385
      %v563 = vpop.f32.mrf.mxu0
      %v564 = vadd.f32 0.0, %v563
      %v565 = vpop.f32.mrf.mxu0
      %v566 = vadd.f32 0.0, %v565
      %567 = vmatprep.mubr.f32.mxu0 0.0
      %568 = vmatmul.mubr.f32.gmra.mxu0 %v388
      %v569 = vpop.f32.mrf.mxu0
      %v570 = vadd.f32 0.0, %v569
      %v571 = vpop.f32.mrf.mxu0
      %v572 = vadd.f32 0.0, %v571
      %573 = vmatprep.mubr.f32.mxu0 0.0
      %574 = vmatmul.mubr.f32.gmra.mxu0 %v391
      %v575 = vpop.f32.mrf.mxu0
      %v576 = vadd.f32 0.0, %v575
      %v577 = vpop.f32.mrf.mxu0
      %v578 = vadd.f32 0.0, %v577
      %579 = vmatprep.mubr.f32.mxu0 0.0
      %580 = vmatmul.mubr.f32.gmra.mxu0 %v394
      %v581 = vpop.f32.mrf.mxu0
      %v582 = vadd.f32 0.0, %v581
      %v583 = vpop.f32.mrf.mxu0
      %v584 = vadd.f32 0.0, %v583
      %585 = vdwg.mxu0
      %590 = vrot.lane.b32.xlu0 %v481, 1
      %v591 = vpop.permute.xlu0 %590
      %592 = vrot.lane.b32.xlu0 %v483, 1
      %v593 = vpop.permute.xlu0 %592
      %594 = vrot.lane.b32.xlu0 %v487, 1
      %v595 = vpop.permute.xlu0 %594
      %596 = vrot.lane.b32.xlu0 %v489, 1
      %v597 = vpop.permute.xlu0 %596
      %vm598 = vcmask 7168
      %v599 = vsel %vm598, %v591, %v593
      %v600 = vsel %vm598, %v595, %v597
      %v605 = vadd.f32 %v469, %v591
      %v606 = vadd.f32 %v471, %v599
      %v607 = vadd.f32 %v475, %v595
      %v608 = vadd.f32 %v477, %v600
      %613 = vrot.lane.b32.xlu0 %v576, 1
      %v614 = vpop.permute.xlu0 %613
      %615 = vrot.lane.b32.xlu0 %v578, 1
      %v616 = vpop.permute.xlu0 %615
      %617 = vrot.lane.b32.xlu0 %v582, 1
      %v618 = vpop.permute.xlu0 %617
      %619 = vrot.lane.b32.xlu0 %v584, 1
      %v620 = vpop.permute.xlu0 %619
      %v621 = vsel %vm598, %v614, %v616
      %v622 = vsel %vm598, %v618, %v620
      %v627 = vadd.f32 %v564, %v614
      %v628 = vadd.f32 %v566, %v621
      %v629 = vadd.f32 %v570, %v618
      %v630 = vadd.f32 %v572, %v622
      %v631 = vlaneseq
      %v632 = vshrl.u32 %v631, 7
      %v633 = vadd.s32 %v632, 8
      %v634 = vlaneseq
      %v635 = vand.u32 %v634, 127
      %v636 = vadd.s32 %v635, 128
      %v637 = vmul.u32 %v635, 15
      %v638 = vmul.u32 %v636, 15
      %v639 = vadd.s32 %v637, %v632
      %v640 = vadd.s32 %v638, %v632
      %v641 = vadd.s32 %v637, %v633
      %v642 = vadd.s32 %v638, %v633
      %vm643 = vcmp.lt.s32.totalorder %v632, 15
      %vm644 = vcmp.lt.s32.totalorder %v633, 15
      %s645 = sld [smem:[#allocation3 + %s27]]
      %s646 = ssub.s32 %s645, 500
      %s647 = sld [smem:[#allocation4 + %s27]]
      %s648 = ssub.s32 %s647, 500
      %v649 = vstv %s646
      %vm650 = vcmp.ge.s32.totalorder %v639, %v649
      %vm651 = vcmp.ge.s32.totalorder %v640, %v649
      %vm652 = vcmp.ge.s32.totalorder %v641, %v649
      %vm653 = vcmp.ge.s32.totalorder %v642, %v649
      %vm654 = vmand %vm643, %vm650
      %vm655 = vmand %vm643, %vm651
      %vm656 = vmand %vm644, %vm652
      %vm657 = vmand %vm644, %vm653
      %v658 = vstv %s645
      %vm659 = vcmp.lt.s32.totalorder %v639, %v658
      %vm660 = vcmp.lt.s32.totalorder %v640, %v658
      %vm661 = vcmp.lt.s32.totalorder %v641, %v658
      %vm662 = vcmp.lt.s32.totalorder %v642, %v658
      %vm663 = vmand %vm654, %vm659
      %vm664 = vmand %vm655, %vm660
      %vm665 = vmand %vm656, %vm661
      %vm666 = vmand %vm657, %vm662
      %671 = vrot.lane.b32.xlu0 %v605, 127
      %v672 = vpop.permute.xlu0 %671
      %673 = vrot.lane.b32.xlu0 %v606, 127
      %v674 = vpop.permute.xlu0 %673
      %675 = vrot.lane.b32.xlu0 %v607, 127
      %v676 = vpop.permute.xlu0 %675
      %677 = vrot.lane.b32.xlu0 %v608, 127
      %v678 = vpop.permute.xlu0 %677
      %vm679 = vcmask 1039360
      %v680 = vsel %vm679, %v672, %v674
      %v681 = vsel %vm679, %v676, %v678
      %v686 = vsel %vm663, %v680, 0.0
      %v687 = vsel %vm664, %v674, 0.0
      %v688 = vsel %vm665, %v681, 0.0
      %v689 = vsel %vm666, %v678, 0.0
      %694 = vrot.lane.b32.xlu0 %v627, 127
      %v695 = vpop.permute.xlu0 %694
      %696 = vrot.lane.b32.xlu0 %v628, 127
      %v697 = vpop.permute.xlu0 %696
      %698 = vrot.lane.b32.xlu0 %v629, 127
      %v699 = vpop.permute.xlu0 %698
      %700 = vrot.lane.b32.xlu0 %v630, 127
      %v701 = vpop.permute.xlu0 %700
      %v702 = vsel %vm679, %v695, %v697
      %v703 = vsel %vm679, %v699, %v701
      %v708 = vsel %vm663, %v702, 0.0
      %v709 = vsel %vm664, %v697, 0.0
      %v710 = vsel %vm665, %v703, 0.0
      %v711 = vsel %vm666, %v701, 0.0
      %vm712 = vcmask 588800
      %v713 = vsel %vm712, %v687, 0.0
      %v714 = vadd.f32 %v686, %v713
      %v715 = vadd.f32 %v714, %v688
      %v716 = vsel %vm712, %v689, 0.0
      %v717 = vadd.f32 %v715, %v716
      %718 = vadd.xlane.f32.xlu0 %v717
      %v719 = vpop.xlane.xlu0 %718
      %v720 = vrot.slane %v719, 4
      %v721 = vadd.f32 %v719, %v720
      %v722 = vrot.slane %v721, 2
      %v723 = vadd.f32 %v721, %v722
      %v724 = vrot.slane %v723, 1
      %v725 = vadd.f32 %v723, %v724
      %s726 = vtos %v725
      %v727 = vstv %s726
      %v728 = vsel %vm712, %v709, 0.0
      %v729 = vadd.f32 %v708, %v728
      %v730 = vadd.f32 %v729, %v710
      %v731 = vsel %vm712, %v711, 0.0
      %v732 = vadd.f32 %v730, %v731
      %733 = vadd.xlane.f32.xlu0 %v732
      %v734 = vpop.xlane.xlu0 %733
      %v735 = vrot.slane %v734, 4
      %v736 = vadd.f32 %v734, %v735
      %v737 = vrot.slane %v736, 2
      %v738 = vadd.f32 %v736, %v737
      %v739 = vrot.slane %v738, 1
      %v740 = vadd.f32 %v738, %v739
      %s741 = vtos %v740
      %v742 = vstv %s741
      %v743 = vmul.f32 %v686, %v686
      %v744 = vmul.f32 %v687, %v687
      %v745 = vmul.f32 %v688, %v688
      %v746 = vmul.f32 %v689, %v689
      %v747 = vsel %vm712, %v744, 0.0
      %v748 = vadd.f32 %v743, %v747
      %v749 = vadd.f32 %v748, %v745
      %v750 = vsel %vm712, %v746, 0.0
      %v751 = vadd.f32 %v749, %v750
      %752 = vadd.xlane.f32.xlu0 %v751
      %v753 = vpop.xlane.xlu0 %752
      %v754 = vrot.slane %v753, 4
      %v755 = vadd.f32 %v753, %v754
      %v756 = vrot.slane %v755, 2
      %v757 = vadd.f32 %v755, %v756
      %v758 = vrot.slane %v757, 1
      %v759 = vadd.f32 %v757, %v758
      %s760 = vtos %v759
      %v761 = vstv %s760
      %v762 = vmul.f32 %v708, %v708
      %v763 = vmul.f32 %v709, %v709
      %v764 = vmul.f32 %v710, %v710
      %v765 = vmul.f32 %v711, %v711
      %v766 = vsel %vm712, %v763, 0.0
      %v767 = vadd.f32 %v762, %v766
      %v768 = vadd.f32 %v767, %v764
      %v769 = vsel %vm712, %v765, 0.0
      %v770 = vadd.f32 %v768, %v769
      %771 = vadd.xlane.f32.xlu0 %v770
      %v772 = vpop.xlane.xlu0 %771
      %v773 = vrot.slane %v772, 4
      %v774 = vadd.f32 %v772, %v773
      %v775 = vrot.slane %v774, 2
      %v776 = vadd.f32 %v774, %v775
      %v777 = vrot.slane %v776, 1
      %v778 = vadd.f32 %v776, %v777
      %s779 = vtos %v778
      %v780 = vstv %s779
      %v781 = vmul.f32 %v686, %v708
      %v782 = vmul.f32 %v687, %v709
      %v783 = vmul.f32 %v688, %v710
      %v784 = vmul.f32 %v689, %v711
      %v785 = vsel %vm712, %v782, 0.0
      %v786 = vadd.f32 %v781, %v785
      %v787 = vadd.f32 %v786, %v783
      %v788 = vsel %vm712, %v784, 0.0
      %v789 = vadd.f32 %v787, %v788
      %790 = vadd.xlane.f32.xlu0 %v789
      %v791 = vpop.xlane.xlu0 %790
      %v792 = vrot.slane %v791, 4
      %v793 = vadd.f32 %v791, %v792
      %v794 = vrot.slane %v793, 2
      %v795 = vadd.f32 %v793, %v794
      %v796 = vrot.slane %v795, 1
      %v797 = vadd.f32 %v795, %v796
      %s798 = vtos %v797
      %v799 = vstv %s798
      %v800 = vmul.f32 %v727, %v727
      %v801 = vmul.f32 %v800, 0.002
      %v802 = vsub.f32 %v761, %v801
      %v803 = vmax.f32 %v802, 0.0
      %v804 = vmul.f32 %v742, %v742
      %v805 = vmul.f32 %v804, 0.002
      %v806 = vsub.f32 %v780, %v805
      %v807 = vmax.f32 %v806, 0.0
      %v808 = vmul.f32 %v803, 0.002004008
      %v809 = vrsqrt.pop %v808
      %v810 = vmul.f32 %v808, %v809
      %vm811 = vcmp.eq.f32.partialorder %v808, inf
      %v812 = vsel %vm811, %v808, %v810
      %vm813 = vcmp.eq.f32.partialorder %v808, 0.0
      %v814 = vand.u32 %v808, 2147483648
      %v815 = vsel %vm813, %v814, %v812
      %v816 = vmul.f32 %v807, 0.002004008
      %v817 = vrsqrt.pop %v816
      %v818 = vmul.f32 %v816, %v817
      %vm819 = vcmp.eq.f32.partialorder %v816, inf
      %v820 = vsel %vm819, %v816, %v818
      %vm821 = vcmp.eq.f32.partialorder %v816, 0.0
      %v822 = vand.u32 %v816, 2147483648
      %v823 = vsel %vm821, %v822, %v820
      %v824 = vmul.f32 %v727, %v742
      %v825 = vmul.f32 %v824, 0.002
      %v826 = vsub.f32 %v799, %v825
      %v827 = vmul.f32 %v826, 0.002
      %v828 = vmul.f32 %v815, %v823
      %v829 = vadd.f32 %v828, 1e-08
      %v830 = vrcp.pop %v829
      %v831 = vmul.f32 %v827, %v830
      %v832 = vstv %s648
      %vm833 = vcmp.ge.s32.totalorder %v639, %v832
      %vm834 = vcmp.ge.s32.totalorder %v640, %v832
      %vm835 = vcmp.ge.s32.totalorder %v641, %v832
      %vm836 = vcmp.ge.s32.totalorder %v642, %v832
      %vm837 = vmand %vm643, %vm833
      %vm838 = vmand %vm643, %vm834
      %vm839 = vmand %vm644, %vm835
      %vm840 = vmand %vm644, %vm836
      %v841 = vstv %s647
      %vm842 = vcmp.lt.s32.totalorder %v639, %v841
      %vm843 = vcmp.lt.s32.totalorder %v640, %v841
      %vm844 = vcmp.lt.s32.totalorder %v641, %v841
      %vm845 = vcmp.lt.s32.totalorder %v642, %v841
      %vm846 = vmand %vm837, %vm842
      %vm847 = vmand %vm838, %vm843
      %vm848 = vmand %vm839, %vm844
      %vm849 = vmand %vm840, %vm845
      %v850 = vsel %vm846, %v680, 0.0
      %v851 = vsel %vm847, %v674, 0.0
      %v852 = vsel %vm848, %v681, 0.0
      %v853 = vsel %vm849, %v678, 0.0
      %v854 = vsel %vm846, %v702, 0.0
      %v855 = vsel %vm847, %v697, 0.0
      %v856 = vsel %vm848, %v703, 0.0
      %v857 = vsel %vm849, %v701, 0.0
      %v858 = vsel %vm712, %v851, 0.0
      %v859 = vadd.f32 %v850, %v858
      %v860 = vadd.f32 %v859, %v852
      %v861 = vsel %vm712, %v853, 0.0
      %v862 = vadd.f32 %v860, %v861
      %863 = vadd.xlane.f32.xlu0 %v862
      %v864 = vpop.xlane.xlu0 %863
      %v865 = vrot.slane %v864, 4
      %v866 = vadd.f32 %v864, %v865
      %v867 = vrot.slane %v866, 2
      %v868 = vadd.f32 %v866, %v867
      %v869 = vrot.slane %v868, 1
      %v870 = vadd.f32 %v868, %v869
      %s871 = vtos %v870
      %v872 = vstv %s871
      %v873 = vsel %vm712, %v855, 0.0
      %v874 = vadd.f32 %v854, %v873
      %v875 = vadd.f32 %v874, %v856
      %v876 = vsel %vm712, %v857, 0.0
      %v877 = vadd.f32 %v875, %v876
      %878 = vadd.xlane.f32.xlu0 %v877
      %v879 = vpop.xlane.xlu0 %878
      %v880 = vrot.slane %v879, 4
      %v881 = vadd.f32 %v879, %v880
      %v882 = vrot.slane %v881, 2
      %v883 = vadd.f32 %v881, %v882
      %v884 = vrot.slane %v883, 1
      %v885 = vadd.f32 %v883, %v884
      %s886 = vtos %v885
      %v887 = vstv %s886
      %v888 = vmul.f32 %v850, %v850
      %v889 = vmul.f32 %v851, %v851
      %v890 = vmul.f32 %v852, %v852
      %v891 = vmul.f32 %v853, %v853
      %v892 = vsel %vm712, %v889, 0.0
      %v893 = vadd.f32 %v888, %v892
      %v894 = vadd.f32 %v893, %v890
      %v895 = vsel %vm712, %v891, 0.0
      %v896 = vadd.f32 %v894, %v895
      %897 = vadd.xlane.f32.xlu0 %v896
      %v898 = vpop.xlane.xlu0 %897
      %v899 = vrot.slane %v898, 4
      %v900 = vadd.f32 %v898, %v899
      %v901 = vrot.slane %v900, 2
      %v902 = vadd.f32 %v900, %v901
      %v903 = vrot.slane %v902, 1
      %v904 = vadd.f32 %v902, %v903
      %s905 = vtos %v904
      %v906 = vstv %s905
      %v907 = vmul.f32 %v854, %v854
      %v908 = vmul.f32 %v855, %v855
      %v909 = vmul.f32 %v856, %v856
      %v910 = vmul.f32 %v857, %v857
      %v911 = vsel %vm712, %v908, 0.0
      %v912 = vadd.f32 %v907, %v911
      %v913 = vadd.f32 %v912, %v909
      %v914 = vsel %vm712, %v910, 0.0
      %v915 = vadd.f32 %v913, %v914
      %916 = vadd.xlane.f32.xlu0 %v915
      %v917 = vpop.xlane.xlu0 %916
      %v918 = vrot.slane %v917, 4
      %v919 = vadd.f32 %v917, %v918
      %v920 = vrot.slane %v919, 2
      %v921 = vadd.f32 %v919, %v920
      %v922 = vrot.slane %v921, 1
      %v923 = vadd.f32 %v921, %v922
      %s924 = vtos %v923
      %v925 = vstv %s924
      %v926 = vmul.f32 %v850, %v854
      %v927 = vmul.f32 %v851, %v855
      %v928 = vmul.f32 %v852, %v856
      %v929 = vmul.f32 %v853, %v857
      %v930 = vsel %vm712, %v927, 0.0
      %v931 = vadd.f32 %v926, %v930
      %v932 = vadd.f32 %v931, %v928
      %v933 = vsel %vm712, %v929, 0.0
      %v934 = vadd.f32 %v932, %v933
      %935 = vadd.xlane.f32.xlu0 %v934
      %v936 = vpop.xlane.xlu0 %935
      %v937 = vrot.slane %v936, 4
      %v938 = vadd.f32 %v936, %v937
      %v939 = vrot.slane %v938, 2
      %v940 = vadd.f32 %v938, %v939
      %v941 = vrot.slane %v940, 1
      %v942 = vadd.f32 %v940, %v941
      %s943 = vtos %v942
      %v944 = vstv %s943
      %v945 = vmul.f32 %v872, %v872
      %v946 = vmul.f32 %v945, 0.002
      %v947 = vsub.f32 %v906, %v946
      %v948 = vmax.f32 %v947, 0.0
      %v949 = vmul.f32 %v887, %v887
      %v950 = vmul.f32 %v949, 0.002
      %v951 = vsub.f32 %v925, %v950
      %v952 = vmax.f32 %v951, 0.0
      %v953 = vmul.f32 %v948, 0.002004008
      %v954 = vrsqrt.pop %v953
      %v955 = vmul.f32 %v953, %v954
      %vm956 = vcmp.eq.f32.partialorder %v953, inf
      %v957 = vsel %vm956, %v953, %v955
      %vm958 = vcmp.eq.f32.partialorder %v953, 0.0
      %v959 = vand.u32 %v953, 2147483648
      %v960 = vsel %vm958, %v959, %v957
      %v961 = vmul.f32 %v952, 0.002004008
      %v962 = vrsqrt.pop %v961
      %v963 = vmul.f32 %v961, %v962
      %vm964 = vcmp.eq.f32.partialorder %v961, inf
      %v965 = vsel %vm964, %v961, %v963
      %vm966 = vcmp.eq.f32.partialorder %v961, 0.0
      %v967 = vand.u32 %v961, 2147483648
      %v968 = vsel %vm966, %v967, %v965
      %v969 = vmul.f32 %v872, %v887
      %v970 = vmul.f32 %v969, 0.002
      %v971 = vsub.f32 %v944, %v970
      %v972 = vmul.f32 %v971, 0.002
      %v973 = vmul.f32 %v960, %v968
      %v974 = vadd.f32 %v973, 1e-08
      %v975 = vrcp.pop %v974
      %v976 = vmul.f32 %v972, %v975
      %v977 = vadd.f32 %v815, 1e-08
      %v978 = vrcp.pop %v977
      %v979 = vmul.f32 %v815, %v978
      %v980 = vlog2.pop %v979
      %v981 = vmul.f32 %v980, 0.6931472
      %v982 = vmul.f32 %v981, 0.4342945
      %v983 = vmul.f32 %v960, %v978
      %v984 = vlog2.pop %v983
      %v985 = vmul.f32 %v984, 0.6931472
      %v986 = vmul.f32 %v985, 0.4342945
      %v987 = vmul.f32 %v831, 2.0
      %v988 = vadd.f32 %v987, %v976
      %v989 = vmul.f32 %v366, 4.012197e-05
      %v990 = vadd.f32 %v982, %v986
      %v991 = vmul.f32 %v990, 0.1
      %v992 = vmul.f32 %v991, 0.5
      %v993 = vsub.f32 %v989, %v992
      %v994 = vmul.f32 %v988, 0.05
      %v995 = vmul.f32 %v994, 0.5
      %v996 = vsub.f32 %v993, %v995
      %vm997 = vcmask 0
      %998 = vst.msk [vmem:[%s245] sm:$0x1] %vm997, %v996
      %p999 = scmp.lt.s32.totalorder %s27, 1
      %s1000 = scalar_select %p999, %s27, 1
      %s1001 = scalar_lea.vmem %s6, %s1000
      // Predicated region
      $region37: #{custom_loss.1} parent=35 // pred_check
        %p1002 = pneg %p144
      $region38: #{custom_loss.1} parent=35 // pred_check_branch
        %1004 = sbr.rel (%p1002) target = $region40
      $region39: #{custom_loss.1} parent=35 // pred_region
        _
      $region40: #{custom_loss.1} parent=35 // pred_fallthru
        _
    $region36: #{custom_loss.1} parent=5 // pred_fallthru
      _
    %p1005 = scmp.le.s32.totalorder 2, %s22
    // Predicated region
    $region41: #{custom_loss.1} parent=5 // pred_check
      %p1006 = pneg %p1005
    $region42: #{custom_loss.1} parent=5 // pred_check_branch
      %1008 = sbr.rel (%p1006) target = $region44
    $region43: #{custom_loss.1} parent=5 // pred_region
      %s1009 = ssub.s32 %s22, 2
      // Predicated region
      $region45: #{custom_loss.1} parent=43 // pred_check
        %p1010 = pneg %p150
      $region46: #{custom_loss.1} parent=43 // pred_check_branch
        %1012 = sbr.rel (%p1010) target = $region48
      $region47: #{custom_loss.1} parent=43 // pred_region
        %p1013 = scmp.lt.s32.totalorder %s28, 1
        %s1014 = scalar_select %p1013, %s28, 1
        %s1015 = scalar_lea.vmem %s6, %s1014
      $region48: #{custom_loss.1} parent=43 // pred_fallthru
        _
    $region44: #{custom_loss.1} parent=5 // pred_fallthru
      _
  $region6: #{custom_loss.1} parent=0 // loop_footer
    %s26 = sadd.s32 1, %s22
  $region7: #{custom_loss.1} parent=0 // loop_footer_branch
    %21 = sbr.rel target = $region3
  $region8: #{custom_loss.1} parent=0 // loop_exit
    _

</llo_original>
